<compile_context>
chip_gen: v5e
topology: v5e:2x2
jax: 0.10.0
libtpu: 0.0.40
codegen_flags: <defaults>
</compile_context>

<pallas_src>
import functools

import numpy as np
import jax
import jax.numpy as jnp
from jax.experimental import pallas as pl
from jax.experimental.pallas import tpu as pltpu


C_PAD = 128  # lane-padded width of the classifier-head output (lane-dense stores)


def _use_bf16_elementwise():
    """bf16 VALUs exist on v6e/v7x; keep the O(n^2) elementwise work in f32 elsewhere."""
    try:
        kind = jax.devices()[0].device_kind.lower()
    except Exception:
        return False
    return any(tag in kind for tag in ("v6", "v7", "7x"))


def _pick_graph_chunk(G, n, H2, H3):
    """Graphs per grid step + explicit VMEM limit, sized from the chip's VMEM capacity."""
    try:
        vmem_cap = int(pltpu.get_tpu_info().vmem_capacity_bytes)
    except Exception:
        vmem_cap = 64 * 1024 * 1024              # conservative default (v7x per-TC VMEM)
    vmem_limit = min(vmem_cap // 2, 64 * 1024 * 1024)
    budget = vmem_limit // 2                     # headroom for double-buffers + temporaries
    per_graph = (
        2 * n * 128 * 4          # x tile (features lane-padded), double-buffered
        + 2 * n * n * 128 * 2    # (n*n, 1) bf16 adjacency-bias tile (lane-padded), x2 bufs
        + 2 * n * 128 * 4        # (n, 1) has-neighbour tile, x2 bufs
        + 2 * n * n * H2 * 4     # pre / hid intermediate (f32 upper bound)
        + 3 * n * n * H3 * 4     # msg (+ slack for fused temporaries)
        + 2 * C_PAD * 4          # padded logits row, x2 bufs
    )
    gb = max(1, min(G, budget // per_graph, 512))
    if G > 1:                                    # keep >=2 grid steps -> feeds both v7x TCs
        gb = min(gb, (G + 1) // 2)
    if gb >= 2:
        gb -= gb % 2                             # Gb*n multiple of 16 -> full bf16 sublanes
    steps = -(-G // gb)
    return gb, steps, vmem_limit


def edgenet_kernel(x_ref, adjb_ref, hasnb_ref,
                   w_mlp_ref, b_mlp_ref,
                   w_e1_ref, b_e1_ref,
                   w_e2_ref, b_e2_ref,
                   w_f1_ref, b_f1_ref,
                   w_f2_ref, b_f2_ref,
                   out_ref, *, use_bf16_ew):
    """One grid step = a chunk of Gb graphs; graph x node flattened into the matmul M dim."""
    f32, bf16 = jnp.float32, jnp.bfloat16
    Gb, n, F = x_ref.shape
    H2 = b_e1_ref.shape[1]
    H3 = w_e2_ref.shape[1]

    # conv0 'mlp' (Linear F->H1, no trailing ReLU) then conv1 'relu'
    x = x_ref[...].reshape(Gb * n, F)
    h = jnp.dot(x.astype(bf16), w_mlp_ref[...], preferred_element_type=f32) + b_mlp_ref[...]
    h = jnp.maximum(h, 0.0)                                     # (Gb*n, H1) f32

    # conv2 EdgeConv(aggr='max'); nn = Linear(2*H1,H2) -> ReLU -> Linear(H2,H3)
    # fused + folded first linear: w_e1 = [W1a - W1b | W1b]  (one 64-lane MXU pass)
    ab = jnp.dot(h.astype(bf16), w_e1_ref[...], preferred_element_type=f32)   # (Gb*n, 2*H2)
    ci = ab[:, :H2] + b_e1_ref[...]                             # target-node term
    bj = ab[:, H2:]                                             # source-node term
    if use_bf16_ew:                                             # bf16 VALUs on v6e/v7x
        ci = ci.astype(bf16)
        bj = bj.astype(bf16)
    pre = ci.reshape(Gb, n, 1, H2) + bj.reshape(Gb, 1, n, H2)   # (Gb, n_tgt, n_src, H2)
    hid = jnp.maximum(pre, 0).astype(bf16)
    msg = (jnp.dot(hid.reshape(Gb * n * n, H2), w_e2_ref[...],
                   preferred_element_type=f32) + b_e2_ref[...])  # (Gb*n*n, H3) f32

    # additive adjacency bias (0 on edges, ~-1e9 off edges), pre-flattened to (n*n, 1):
    # plain lane broadcast on the VPU, no lane->sublane relayout.  Soft mask: |msg| << 1e9.
    msg = msg + adjb_ref[...].astype(f32).reshape(Gb * n * n, 1)
    agg = jnp.max(msg.reshape(Gb * n, n, H3), axis=1)           # max-aggregate over sources
    has_nb = hasnb_ref[...].reshape(Gb * n, 1) > 0.5
    hx = jnp.where(has_nb, agg, 0.0)                            # PyG 'max' aggr: isolated -> 0

    # global_max_pool over each graph's nodes
    pooled = jnp.max(hx.reshape(Gb, n, H3), axis=1)             # (Gb, H3)

    # fc head, batched over the whole chunk: Linear(H3,64) -> ReLU -> Linear(64, 128-pad)
    fc1 = jnp.maximum(
        jnp.dot(pooled.astype(bf16), w_f1_ref[...], preferred_element_type=f32)
        + b_f1_ref[...], 0.0)
    logits = (jnp.dot(fc1.astype(bf16), w_f2_ref[...], preferred_element_type=f32)
              + b_f2_ref[...])                                  # (Gb, 128); pad lanes ~ -1e9

    # log_softmax over lanes (pad lanes contribute exp(~-1e9) == 0); lane-dense store
    m = jnp.max(logits, axis=1, keepdims=True)
    z = logits - m
    lse = jnp.log(jnp.sum(jnp.exp(z), axis=1, keepdims=True))
    out_ref[...] = z - lse


def edgenet_forward(x3, adj_bias3, has_nb3, wk, num_classes, *, use_bf16_ew=None):
    """x3: [G, n, F] f32 node features; adj_bias3: [G, n*n, 1] bf16 additive adjacency bias;
    has_nb3: [G, n, 1] f32 (1.0 where the node has at least one neighbour).
    wk: bf16 matmul weights ('w_e1' folded+fused to [H1, 2*H2], 'w_f2'/'b_f2' lane-padded
    to 128 outputs) + f32 biases.  Returns [G, num_classes] log-probabilities."""
    G, n, F = x3.shape
    H2 = wk['b_e1'].shape[1]
    H3 = wk['b_e2'].shape[1]
    c_pad = wk['b_f2'].shape[1]
    if use_bf16_ew is None:
        use_bf16_ew = _use_bf16_elementwise()

    gb, steps, vmem_limit = _pick_graph_chunk(G, n, H2, H3)
    g_pad = gb * steps
    if g_pad != G:                       # pad with dummy graphs; sliced off below
        pad = g_pad - G
        x3 = jnp.pad(x3, ((0, pad), (0, 0), (0, 0)))
        adj_bias3 = jnp.pad(adj_bias3, ((0, pad), (0, 0), (0, 0)))
        has_nb3 = jnp.pad(has_nb3, ((0, pad), (0, 0), (0, 0)))

    weights = [wk['w_mlp'], wk['b_mlp'], wk['w_e1'], wk['b_e1'],
               wk['w_e2'], wk['b_e2'], wk['w_f1'], wk['b_f1'],
               wk['w_f2'], wk['b_f2']]
    data_specs = [
        pl.BlockSpec((gb, n, F), lambda g: (g, 0, 0)),
        pl.BlockSpec((gb, n * n, 1), lambda g: (g, 0, 0)),
        pl.BlockSpec((gb, n, 1), lambda g: (g, 0, 0)),
    ]
    # weights/biases: full blocks with constant index_map -> stay VMEM-resident
    weight_specs = [pl.BlockSpec(w.shape, lambda g: (0, 0)) for w in weights]

    kernel = functools.partial(edgenet_kernel, use_bf16_ew=use_bf16_ew)
    out = pl.pallas_call(
        kernel,
        grid=(steps,),
        in_specs=data_specs + weight_specs,
        out_specs=pl.BlockSpec((None, gb, c_pad), lambda g: (g, 0, 0)),
        out_shape=jax.ShapeDtypeStruct((steps, gb, c_pad), jnp.float32),
        compiler_params=pltpu.CompilerParams(
            dimension_semantics=("parallel",),      # chunk axis shards across v7x's 2 TCs
            vmem_limit_bytes=int(vmem_limit)),
    )(x3, adj_bias3, has_nb3, *weights)
    return out.reshape(g_pad, c_pad)[:G, :num_classes]


def reference_forward_mixed(x3, adj_bias3, has_nb3, wk, num_classes, use_bf16_ew):
    """Pure-JAX transliteration of the kernel math (same bf16 casts, folded/padded weights,
    f32 accumulation) — structural check of the Pallas plumbing."""
    bf16, f32 = jnp.bfloat16, jnp.float32
    G, n, F = x3.shape
    H2 = wk['b_e1'].shape[1]
    H3 = wk['b_e2'].shape[1]

    def bdot(a, w):
        return jnp.dot(a.astype(bf16), w, preferred_element_type=f32)

    h = jnp.maximum(bdot(x3.reshape(G * n, F), wk['w_mlp']) + wk['b_mlp'], 0.0)
    ab = bdot(h, wk['w_e1'])
    ci = ab[:, :H2] + wk['b_e1']
    bj = ab[:, H2:]
    if use_bf16_ew:
        ci = ci.astype(bf16)
        bj = bj.astype(bf16)
    hid = jnp.maximum(ci.reshape(G, n, 1, H2) + bj.reshape(G, 1, n, H2), 0).astype(bf16)
    msg = bdot(hid.reshape(G * n * n, H2), wk['w_e2']) + wk['b_e2']
    msg = msg + adj_bias3.astype(f32).reshape(G * n * n, 1)
    agg = jnp.max(msg.reshape(G * n, n, H3), axis=1)
    hx = jnp.where(has_nb3.reshape(G * n, 1) > 0.5, agg, 0.0)
    pooled = jnp.max(hx.reshape(G, n, H3), axis=1)
    fc1 = jnp.maximum(bdot(pooled, wk['w_f1']) + wk['b_f1'], 0.0)
    logits = bdot(fc1, wk['w_f2']) + wk['b_f2']
    m = jnp.max(logits, axis=1, keepdims=True)
    z = logits - m
    lse = jnp.log(jnp.sum(jnp.exp(z), axis=1, keepdims=True))
    return (z - lse)[:, :num_classes]


def reference_forward_f32(x3, adj3, p):
    """Full-f32 reference with the literal PyG EdgeConv concat([x_i, x_j - x_i])."""
    hp = jax.lax.Precision.HIGHEST
    h = jnp.maximum(jnp.dot(x3, p['w_mlp'], precision=hp) + p['b_mlp'], 0.0)
    Gn, n, h1 = h.shape
    w_e1 = jnp.concatenate([p['w_e1a'], p['w_e1b']], axis=0)          # [2*H1, H2]
    xi = jnp.broadcast_to(h[:, :, None, :], (Gn, n, n, h1))
    xj = jnp.broadcast_to(h[:, None, :, :], (Gn, n, n, h1))
    feat = jnp.concatenate([xi, xj - xi], axis=-1)
    hid = jnp.maximum(jnp.dot(feat, w_e1, precision=hp) + p['b_e1'], 0.0)
    msg = jnp.dot(hid, p['w_e2'], precision=hp) + p['b_e2']
    neg = -1e30
    agg = jnp.max(jnp.where(adj3[..., None] > 0, msg, neg), axis=2)
    hx = jnp.where(jnp.sum(adj3, axis=2, keepdims=True) > 0, agg, 0.0)
    pooled = jnp.max(hx, axis=1)
    fc1 = jnp.maximum(jnp.dot(pooled, p['w_f1'], precision=hp) + p['b_f1'], 0.0)
    logits = jnp.dot(fc1, p['w_f2'], precision=hp) + p['b_f2']
    return jax.nn.log_softmax(logits, axis=1)


if __name__ == "__main__":
    NUM_FEATURES, NUM_CLASSES = 4, 3
    H1, H2, H3, HFC = 32, 32, 32, 64
    NODES_PER_GRAPH, NUM_GRAPHS = 8, 2

    key = jax.random.PRNGKey(0)
    ks = jax.random.split(key, 16)

    def w_init(k, fin, fout):
        return (jax.random.normal(k, (fin, fout), jnp.float32) / np.sqrt(fin)).astype(jnp.float32)

    def b_init(k, fout):
        return (0.1 * jax.random.normal(k, (1, fout), jnp.float32)).astype(jnp.float32)

    p32 = {
        'w_mlp': w_init(ks[0], NUM_FEATURES, H1), 'b_mlp': b_init(ks[1], H1),
        'w_e1a': w_init(ks[2], H1, H2),            # W1 rows acting on x_i
        'w_e1b': w_init(ks[3], H1, H2),            # W1 rows acting on (x_j - x_i)
        'b_e1':  b_init(ks[4], H2),
        'w_e2':  w_init(ks[5], H2, H3),           'b_e2':  b_init(ks[6], H3),
        'w_f1':  w_init(ks[7], H3, HFC),          'b_f1':  b_init(ks[8], HFC),
        'w_f2':  w_init(ks[9], HFC, NUM_CLASSES), 'b_f2':  b_init(ks[10], NUM_CLASSES),
    }

    # lane-padded classifier head: pad columns get weight 0 and bias -1e9 so they vanish
    # under log_softmax; gives a 128-lane MXU pass and an unmasked lane-dense store.
    w_f2_pad = jnp.zeros((HFC, C_PAD), jnp.float32).at[:, :NUM_CLASSES].set(p32['w_f2'])
    b_f2_pad = jnp.full((1, C_PAD), -1e9, jnp.float32).at[:, :NUM_CLASSES].set(p32['b_f2'])

    # kernel-side params: bf16 matmul weights (EdgeConv-1 folded+fused host-side), f32 biases
    wk = {
        'w_mlp': p32['w_mlp'].astype(jnp.bfloat16),
        'w_e1':  jnp.concatenate([p32['w_e1a'] - p32['w_e1b'], p32['w_e1b']],
                                 axis=1).astype(jnp.bfloat16),
        'w_e2':  p32['w_e2'].astype(jnp.bfloat16),
        'w_f1':  p32['w_f1'].astype(jnp.bfloat16),
        'w_f2':  w_f2_pad.astype(jnp.bfloat16),
        'b_mlp': p32['b_mlp'], 'b_e1': p32['b_e1'], 'b_e2': p32['b_e2'],
        'b_f1':  p32['b_f1'], 'b_f2': b_f2_pad,
    }

    # node features (data.x, keys='pos'), batched as [G, n, F]
    x3 = jax.random.normal(ks[11], (NUM_GRAPHS, NODES_PER_GRAPH, NUM_FEATURES), jnp.float32)

    # data.edge_index: a directed ring inside each graph; to_undirected via symmetrization.
    # adj3[g, i, j] = 1 <=> node i receives a message from node j (edges never cross graphs).
    ring_src = np.arange(NODES_PER_GRAPH, dtype=np.int32)
    ring_dst = (ring_src + 1) % NODES_PER_GRAPH
    adj_g = np.zeros((NODES_PER_GRAPH, NODES_PER_GRAPH), np.float32)
    adj_g[ring_dst, ring_src] = 1.0
    adj_g = np.maximum(adj_g, adj_g.T)                              # to_undirected
    adj3 = jnp.asarray(np.broadcast_to(adj_g, (NUM_GRAPHS,) + adj_g.shape).copy())

    # kernel-side graph inputs: additive adjacency bias pre-flattened to (G, n*n, 1) bf16
    # (lane-splat in-kernel, no relayout) and has-neighbour flags (G, n, 1) f32
    adj_bias3 = ((adj3 - 1.0) * 1e9).reshape(
        NUM_GRAPHS, NODES_PER_GRAPH * NODES_PER_GRAPH, 1).astype(jnp.bfloat16)
    has_nb3 = (jnp.sum(adj3, axis=2, keepdims=True) > 0).astype(jnp.float32)

    use_bf16_ew = _use_bf16_elementwise()

    out = jax.block_until_ready(
        edgenet_forward(x3, adj_bias3, has_nb3, wk, NUM_CLASSES, use_bf16_ew=use_bf16_ew))
    ref_mixed = jax.block_until_ready(
        reference_forward_mixed(x3, adj_bias3, has_nb3, wk, NUM_CLASSES, use_bf16_ew))
    ref_f32 = jax.block_until_ready(reference_forward_f32(x3, adj3, p32))

    assert out.shape == (NUM_GRAPHS, NUM_CLASSES)
    # structural check vs. a pure-JAX transliteration with the same bf16 rounding points
    np.testing.assert_allclose(np.asarray(out), np.asarray(ref_mixed), rtol=1e-2, atol=1e-2)
    # loose semantic check vs. the full-f32 literal concat([x_i, x_j - x_i]) formulation
    # (difference is only bf16 rounding of MXU operands / the pre-activation)
    np.testing.assert_allclose(np.asarray(out), np.asarray(ref_f32), rtol=0.0, atol=0.25)
    print("KERNEL_OK")
</pallas_src>

<mosaic_0001>
module attributes {stable_mosaic.version = 11 : i64} {
  func.func @edgenet_kernel(%arg0: i32, %arg1: memref<1x8x4xf32, #tpu.memory_space<vmem>>, %arg2: memref<1x64x1xbf16, #tpu.memory_space<vmem>>, %arg3: memref<1x8x1xf32, #tpu.memory_space<vmem>>, %arg4: memref<4x32xbf16, #tpu.memory_space<vmem>>, %arg5: memref<1x32xf32, #tpu.memory_space<vmem>>, %arg6: memref<32x64xbf16, #tpu.memory_space<vmem>>, %arg7: memref<1x32xf32, #tpu.memory_space<vmem>>, %arg8: memref<32x32xbf16, #tpu.memory_space<vmem>>, %arg9: memref<1x32xf32, #tpu.memory_space<vmem>>, %arg10: memref<32x64xbf16, #tpu.memory_space<vmem>>, %arg11: memref<1x64xf32, #tpu.memory_space<vmem>>, %arg12: memref<64x128xbf16, #tpu.memory_space<vmem>>, %arg13: memref<1x128xf32, #tpu.memory_space<vmem>>, %arg14: memref<1x1x128xf32, #tpu.memory_space<vmem>>) attributes {dimension_semantics = [#tpu.dimension_semantics<parallel>], iteration_bounds = array<i64: 2>, scalar_prefetch = 0 : i64, scratch_operands = 0 : i64, tpu.core_type = #tpu.core_type<tc>, window_params = [{transform_indices = @transform_0, window_bounds = array<i64: 1, 8, 4>}, {transform_indices = @transform_1, window_bounds = array<i64: 1, 64, 1>}, {transform_indices = @transform_2, window_bounds = array<i64: 1, 8, 1>}, {pipeline_mode = #tpu.pipeline_mode<synchronous>, transform_indices = @transform_3, window_bounds = array<i64: 4, 32>}, {pipeline_mode = #tpu.pipeline_mode<synchronous>, transform_indices = @transform_4, window_bounds = array<i64: 1, 32>}, {pipeline_mode = #tpu.pipeline_mode<synchronous>, transform_indices = @transform_5, window_bounds = array<i64: 32, 64>}, {pipeline_mode = #tpu.pipeline_mode<synchronous>, transform_indices = @transform_6, window_bounds = array<i64: 1, 32>}, {pipeline_mode = #tpu.pipeline_mode<synchronous>, transform_indices = @transform_7, window_bounds = array<i64: 32, 32>}, {pipeline_mode = #tpu.pipeline_mode<synchronous>, transform_indices = @transform_8, window_bounds = array<i64: 1, 32>}, {pipeline_mode = #tpu.pipeline_mode<synchronous>, transform_indices = @transform_9, window_bounds = array<i64: 32, 64>}, {pipeline_mode = #tpu.pipeline_mode<synchronous>, transform_indices = @transform_10, window_bounds = array<i64: 1, 64>}, {pipeline_mode = #tpu.pipeline_mode<synchronous>, transform_indices = @transform_11, window_bounds = array<i64: 64, 128>}, {pipeline_mode = #tpu.pipeline_mode<synchronous>, transform_indices = @transform_12, window_bounds = array<i64: 1, 128>}, {transform_indices = @transform_13, window_bounds = array<i64: 1, 1, 128>}]} {
    %c0 = arith.constant 0 : index
    %c0_0 = arith.constant 0 : index
    %c0_1 = arith.constant 0 : index
    %0 = vector.load %arg1[%c0, %c0_0, %c0_1] : memref<1x8x4xf32, #tpu.memory_space<vmem>>, vector<1x8x4xf32>
    %1 = vector.shape_cast %0 : vector<1x8x4xf32> to vector<8x4xf32>
    %2 = arith.truncf %1 : vector<8x4xf32> to vector<8x4xbf16>
    %c0_2 = arith.constant 0 : index
    %c0_3 = arith.constant 0 : index
    %3 = vector.load %arg4[%c0_2, %c0_3] : memref<4x32xbf16, #tpu.memory_space<vmem>>, vector<4x32xbf16>
    %cst = arith.constant dense<0.000000e+00> : vector<8x32xf32>
    %4 = tpu.matmul %2, %3, %cst {dimension_numbers = #tpu.dot_dimension_numbers<[1], [0], [0], [1], [0, 0, 1, 1], [], []>} : vector<8x4xbf16>, vector<4x32xbf16>, vector<8x32xf32> -> vector<8x32xf32>
    %c0_4 = arith.constant 0 : index
    %c0_5 = arith.constant 0 : index
    %5 = vector.load %arg5[%c0_4, %c0_5] : memref<1x32xf32, #tpu.memory_space<vmem>>, vector<1x32xf32>
    %6 = vector.broadcast %5 : vector<1x32xf32> to vector<8x32xf32>
    %7 = arith.addf %4, %6 : vector<8x32xf32>
    %cst_6 = arith.constant 0.000000e+00 : f32
    %8 = vector.broadcast %cst_6 : f32 to vector<8x32xf32>
    %9 = arith.maximumf %7, %8 : vector<8x32xf32>
    %10 = arith.truncf %9 : vector<8x32xf32> to vector<8x32xbf16>
    %c0_7 = arith.constant 0 : index
    %c0_8 = arith.constant 0 : index
    %11 = vector.load %arg6[%c0_7, %c0_8] : memref<32x64xbf16, #tpu.memory_space<vmem>>, vector<32x64xbf16>
    %cst_9 = arith.constant dense<0.000000e+00> : vector<8x64xf32>
    %12 = tpu.matmul %10, %11, %cst_9 {dimension_numbers = #tpu.dot_dimension_numbers<[1], [0], [0], [1], [0, 0, 1, 1], [], []>} : vector<8x32xbf16>, vector<32x64xbf16>, vector<8x64xf32> -> vector<8x64xf32>
    %13 = vector.extract_strided_slice %12 {offsets = [0, 0], sizes = [8, 32], strides = [1, 1]} : vector<8x64xf32> to vector<8x32xf32>
    %c0_10 = arith.constant 0 : index
    %c0_11 = arith.constant 0 : index
    %14 = vector.load %arg7[%c0_10, %c0_11] : memref<1x32xf32, #tpu.memory_space<vmem>>, vector<1x32xf32>
    %15 = vector.broadcast %14 : vector<1x32xf32> to vector<8x32xf32>
    %16 = arith.addf %13, %15 : vector<8x32xf32>
    %17 = vector.extract_strided_slice %12 {offsets = [0, 32], sizes = [8, 32], strides = [1, 1]} : vector<8x64xf32> to vector<8x32xf32>
    %18 = vector.shape_cast %16 : vector<8x32xf32> to vector<1x8x1x32xf32>
    %19 = vector.shape_cast %17 : vector<8x32xf32> to vector<1x1x8x32xf32>
    %20 = vector.broadcast %18 : vector<1x8x1x32xf32> to vector<1x8x8x32xf32>
    %21 = vector.broadcast %19 : vector<1x1x8x32xf32> to vector<1x8x8x32xf32>
    %22 = arith.addf %20, %21 : vector<1x8x8x32xf32>
    %cst_12 = arith.constant 0.000000e+00 : f32
    %23 = vector.broadcast %cst_12 : f32 to vector<1x8x8x32xf32>
    %24 = arith.maximumf %22, %23 : vector<1x8x8x32xf32>
    %25 = arith.truncf %24 : vector<1x8x8x32xf32> to vector<1x8x8x32xbf16>
    %26 = vector.shape_cast %25 : vector<1x8x8x32xbf16> to vector<64x32xbf16>
    %c0_13 = arith.constant 0 : index
    %c0_14 = arith.constant 0 : index
    %27 = vector.load %arg8[%c0_13, %c0_14] : memref<32x32xbf16, #tpu.memory_space<vmem>>, vector<32x32xbf16>
    %cst_15 = arith.constant dense<0.000000e+00> : vector<64x32xf32>
    %28 = tpu.matmul %26, %27, %cst_15 {dimension_numbers = #tpu.dot_dimension_numbers<[1], [0], [0], [1], [0, 0, 1, 1], [], []>} : vector<64x32xbf16>, vector<32x32xbf16>, vector<64x32xf32> -> vector<64x32xf32>
    %c0_16 = arith.constant 0 : index
    %c0_17 = arith.constant 0 : index
    %29 = vector.load %arg9[%c0_16, %c0_17] : memref<1x32xf32, #tpu.memory_space<vmem>>, vector<1x32xf32>
    %30 = vector.broadcast %29 : vector<1x32xf32> to vector<64x32xf32>
    %31 = arith.addf %28, %30 : vector<64x32xf32>
    %c0_18 = arith.constant 0 : index
    %c0_19 = arith.constant 0 : index
    %c0_20 = arith.constant 0 : index
    %32 = vector.load %arg2[%c0_18, %c0_19, %c0_20] : memref<1x64x1xbf16, #tpu.memory_space<vmem>>, vector<1x64x1xbf16>
    %33 = arith.extf %32 : vector<1x64x1xbf16> to vector<1x64x1xf32>
    %34 = vector.shape_cast %33 : vector<1x64x1xf32> to vector<64x1xf32>
    %35 = vector.broadcast %34 : vector<64x1xf32> to vector<64x32xf32>
    %36 = arith.addf %31, %35 : vector<64x32xf32>
    %37 = vector.shape_cast %36 : vector<64x32xf32> to vector<8x8x32xf32>
    %cst_21 = arith.constant dense<0xFF800000> : vector<8x32xf32>
    %38 = vector.multi_reduction <maximumf>, %37, %cst_21 [1] : vector<8x8x32xf32> to vector<8x32xf32>
    %c0_22 = arith.constant 0 : index
    %c0_23 = arith.constant 0 : index
    %c0_24 = arith.constant 0 : index
    %39 = vector.load %arg3[%c0_22, %c0_23, %c0_24] : memref<1x8x1xf32, #tpu.memory_space<vmem>>, vector<1x8x1xf32>
    %40 = vector.shape_cast %39 : vector<1x8x1xf32> to vector<8x1xf32>
    %cst_25 = arith.constant 5.000000e-01 : f32
    %41 = vector.broadcast %cst_25 : f32 to vector<8x1xf32>
    %42 = arith.cmpf ogt, %40, %41 : vector<8x1xf32>
    %cst_26 = arith.constant 0.000000e+00 : f32
    %43 = vector.shape_cast %42 : vector<8x1xi1> to vector<8x1xi1>
    %44 = vector.broadcast %43 : vector<8x1xi1> to vector<8x32xi1>
    %45 = vector.broadcast %cst_26 : f32 to vector<8x32xf32>
    %46 = arith.select %44, %38, %45 : vector<8x32xi1>, vector<8x32xf32>
    %47 = vector.shape_cast %46 : vector<8x32xf32> to vector<1x8x32xf32>
    %cst_27 = arith.constant dense<0xFF800000> : vector<1x32xf32>
    %48 = vector.multi_reduction <maximumf>, %47, %cst_27 [1] : vector<1x8x32xf32> to vector<1x32xf32>
    %49 = arith.truncf %48 : vector<1x32xf32> to vector<1x32xbf16>
    %c0_28 = arith.constant 0 : index
    %c0_29 = arith.constant 0 : index
    %50 = vector.load %arg10[%c0_28, %c0_29] : memref<32x64xbf16, #tpu.memory_space<vmem>>, vector<32x64xbf16>
    %cst_30 = arith.constant dense<0.000000e+00> : vector<1x64xf32>
    %51 = tpu.matmul %49, %50, %cst_30 {dimension_numbers = #tpu.dot_dimension_numbers<[1], [0], [0], [1], [0, 0, 1, 1], [], []>} : vector<1x32xbf16>, vector<32x64xbf16>, vector<1x64xf32> -> vector<1x64xf32>
    %c0_31 = arith.constant 0 : index
    %c0_32 = arith.constant 0 : index
    %52 = vector.load %arg11[%c0_31, %c0_32] : memref<1x64xf32, #tpu.memory_space<vmem>>, vector<1x64xf32>
    %53 = arith.addf %51, %52 : vector<1x64xf32>
    %cst_33 = arith.constant 0.000000e+00 : f32
    %54 = vector.broadcast %cst_33 : f32 to vector<1x64xf32>
    %55 = arith.maximumf %53, %54 : vector<1x64xf32>
    %56 = arith.truncf %55 : vector<1x64xf32> to vector<1x64xbf16>
    %c0_34 = arith.constant 0 : index
    %c0_35 = arith.constant 0 : index
    %57 = vector.load %arg12[%c0_34, %c0_35] : memref<64x128xbf16, #tpu.memory_space<vmem>>, vector<64x128xbf16>
    %cst_36 = arith.constant dense<0.000000e+00> : vector<1x128xf32>
    %58 = tpu.matmul %56, %57, %cst_36 {dimension_numbers = #tpu.dot_dimension_numbers<[1], [0], [0], [1], [0, 0, 1, 1], [], []>} : vector<1x64xbf16>, vector<64x128xbf16>, vector<1x128xf32> -> vector<1x128xf32>
    %c0_37 = arith.constant 0 : index
    %c0_38 = arith.constant 0 : index
    %59 = vector.load %arg13[%c0_37, %c0_38] : memref<1x128xf32, #tpu.memory_space<vmem>>, vector<1x128xf32>
    %60 = arith.addf %58, %59 : vector<1x128xf32>
    %cst_39 = arith.constant dense<0xFF800000> : vector<1xf32>
    %61 = vector.multi_reduction <maximumf>, %60, %cst_39 [1] : vector<1x128xf32> to vector<1xf32>
    %62 = vector.shape_cast %61 : vector<1xf32> to vector<1x1xf32>
    %63 = vector.broadcast %62 : vector<1x1xf32> to vector<1x128xf32>
    %64 = arith.subf %60, %63 : vector<1x128xf32>
    %65 = math.exp %64 : vector<1x128xf32>
    %cst_40 = arith.constant dense<0.000000e+00> : vector<1xf32>
    %66 = vector.multi_reduction <add>, %65, %cst_40 [1] : vector<1x128xf32> to vector<1xf32>
    %67 = vector.shape_cast %66 : vector<1xf32> to vector<1x1xf32>
    %68 = math.log %67 : vector<1x1xf32>
    %69 = vector.broadcast %68 : vector<1x1xf32> to vector<1x128xf32>
    %70 = arith.subf %64, %69 : vector<1x128xf32>
    %c0_41 = arith.constant 0 : index
    %c0_42 = arith.constant 0 : index
    %c0_43 = arith.constant 0 : index
    %71 = vector.load %arg14[%c0_41, %c0_42, %c0_43] : memref<1x1x128xf32, #tpu.memory_space<vmem>>, vector<1x1x128xf32>
    %72 = vector.shape_cast %71 : vector<1x1x128xf32> to vector<1x128xf32>
    %73 = vector.shape_cast %70 : vector<1x128xf32> to vector<1x1x128xf32>
    tpu.vector_store %arg14[%c0_41, %c0_42, %c0_43], %73 {strides = array<i32>} : memref<1x1x128xf32, #tpu.memory_space<vmem>>, vector<1x1x128xf32>,
    return
  }
  func.func @transform_0(%arg0: i32) -> (i32, i32, i32) {
    %c0_i32 = arith.constant 0 : i32
    %c0_i32_0 = arith.constant 0 : i32
    %c0_i32_1 = arith.constant 0 : i32
    return %arg0, %c0_i32, %c0_i32_0 : i32, i32, i32
  }
  func.func @transform_1(%arg0: i32) -> (i32, i32, i32) {
    %c0_i32 = arith.constant 0 : i32
    %c0_i32_0 = arith.constant 0 : i32
    %c0_i32_1 = arith.constant 0 : i32
    return %arg0, %c0_i32, %c0_i32_0 : i32, i32, i32
  }
  func.func @transform_2(%arg0: i32) -> (i32, i32, i32) {
    %c0_i32 = arith.constant 0 : i32
    %c0_i32_0 = arith.constant 0 : i32
    %c0_i32_1 = arith.constant 0 : i32
    return %arg0, %c0_i32, %c0_i32_0 : i32, i32, i32
  }
  func.func @transform_3(%arg0: i32) -> (i32, i32) {
    %c0_i32 = arith.constant 0 : i32
    %c0_i32_0 = arith.constant 0 : i32
    %c0_i32_1 = arith.constant 0 : i32
    return %c0_i32, %c0_i32_0 : i32, i32
  }
  func.func @transform_4(%arg0: i32) -> (i32, i32) {
    %c0_i32 = arith.constant 0 : i32
    %c0_i32_0 = arith.constant 0 : i32
    %c0_i32_1 = arith.constant 0 : i32
    return %c0_i32, %c0_i32_0 : i32, i32
  }
  func.func @transform_5(%arg0: i32) -> (i32, i32) {
    %c0_i32 = arith.constant 0 : i32
    %c0_i32_0 = arith.constant 0 : i32
    %c0_i32_1 = arith.constant 0 : i32
    return %c0_i32, %c0_i32_0 : i32, i32
  }
  func.func @transform_6(%arg0: i32) -> (i32, i32) {
    %c0_i32 = arith.constant 0 : i32
    %c0_i32_0 = arith.constant 0 : i32
    %c0_i32_1 = arith.constant 0 : i32
    return %c0_i32, %c0_i32_0 : i32, i32
  }
  func.func @transform_7(%arg0: i32) -> (i32, i32) {
    %c0_i32 = arith.constant 0 : i32
    %c0_i32_0 = arith.constant 0 : i32
    %c0_i32_1 = arith.constant 0 : i32
    return %c0_i32, %c0_i32_0 : i32, i32
  }
  func.func @transform_8(%arg0: i32) -> (i32, i32) {
    %c0_i32 = arith.constant 0 : i32
    %c0_i32_0 = arith.constant 0 : i32
    %c0_i32_1 = arith.constant 0 : i32
    return %c0_i32, %c0_i32_0 : i32, i32
  }
  func.func @transform_9(%arg0: i32) -> (i32, i32) {
    %c0_i32 = arith.constant 0 : i32
    %c0_i32_0 = arith.constant 0 : i32
    %c0_i32_1 = arith.constant 0 : i32
    return %c0_i32, %c0_i32_0 : i32, i32
  }
  func.func @transform_10(%arg0: i32) -> (i32, i32) {
    %c0_i32 = arith.constant 0 : i32
    %c0_i32_0 = arith.constant 0 : i32
    %c0_i32_1 = arith.constant 0 : i32
    return %c0_i32, %c0_i32_0 : i32, i32
  }
  func.func @transform_11(%arg0: i32) -> (i32, i32) {
    %c0_i32 = arith.constant 0 : i32
    %c0_i32_0 = arith.constant 0 : i32
    %c0_i32_1 = arith.constant 0 : i32
    return %c0_i32, %c0_i32_0 : i32, i32
  }
  func.func @transform_12(%arg0: i32) -> (i32, i32) {
    %c0_i32 = arith.constant 0 : i32
    %c0_i32_0 = arith.constant 0 : i32
    %c0_i32_1 = arith.constant 0 : i32
    return %c0_i32, %c0_i32_0 : i32, i32
  }
  func.func @transform_13(%arg0: i32) -> (i32, i32, i32) {
    %c0_i32 = arith.constant 0 : i32
    %c0_i32_0 = arith.constant 0 : i32
    %c0_i32_1 = arith.constant 0 : i32
    return %arg0, %c0_i32, %c0_i32_0 : i32, i32, i32
  }
}

</mosaic_0001>

<llo_original>
// kernel: tpu_custom_call.1
$region0: #{tpu_custom_call.1}
  #allocation0 [shape = 'u32[]', space=smem, size = 0x4, offset = 0x4, fixed_abs, tag = 'smem constant byte address 0x4 - core index']
  #allocation1 [shape = 'u32[72,128]{1,0:T(1,128)}', space=vmem, size = 0x9000, scoped, tag = 'internal scratch']
  %s0 = inlined_call_operand.vmem [shape: f32[2,8,4], index: 0, kind: input, shape index: {}]
  %s1 = inlined_call_operand.vmem [shape: bf16[2,64,1], index: 1, kind: input, shape index: {}]
  %s2 = inlined_call_operand.vmem [shape: f32[2,8,1], index: 2, kind: input, shape index: {}]
  %s3 = inlined_call_operand.vmem [shape: bf16[4,32], index: 3, kind: input, shape index: {}]
  %s4 = inlined_call_operand.vmem [shape: f32[1,32], index: 4, kind: input, shape index: {}]
  %s5 = inlined_call_operand.vmem [shape: bf16[32,64], index: 5, kind: input, shape index: {}]
  %s6 = inlined_call_operand.vmem [shape: f32[1,32], index: 6, kind: input, shape index: {}]
  %s7 = inlined_call_operand.vmem [shape: bf16[32,32], index: 7, kind: input, shape index: {}]
  %s8 = inlined_call_operand.vmem [shape: f32[1,32], index: 8, kind: input, shape index: {}]
  %s9 = inlined_call_operand.vmem [shape: bf16[32,64], index: 9, kind: input, shape index: {}]
  %s10 = inlined_call_operand.vmem [shape: f32[1,64], index: 10, kind: input, shape index: {}]
  %s11 = inlined_call_operand.vmem [shape: bf16[64,128], index: 11, kind: input, shape index: {}]
  %s12 = inlined_call_operand.vmem [shape: f32[1,128], index: 12, kind: input, shape index: {}]
  %s13 = inlined_call_operand.hbm [shape: f32[2,1,128], index: 13, kind: output, shape index: {}]
  %s14 = sld [smem:[#allocation0]]
  $region85: #{tpu_custom_call.1} parent=0
    _
  %s16 = ssub.s32 1, %s14
  %s17 = scalar_select 0, %s16, %s14
  $region1: #{tpu_custom_call.1} parent=0
    #allocation2 [shape = 'u8[1024]{0}', space=vmem, size = 0x400, scoped, tag = 'output window, operand 0']
    #allocation3 [shape = 's32[2]{0}', space=sflag, size = 0x8, scoped, tag = 'scoped memory for tpu_custom_call.1']
    %18 = vsyncpa [#allocation3], 0
    %s19 = scalar_lea.sflag [#allocation3], 1
    %20 = vsyncpa %s19, 0
    loop: start=0, step=1, limit=4
    $region2: #{tpu_custom_call.1} parent=1 // loop_pre_header
      _
    $region3: #{tpu_custom_call.1} parent=1 // loop_header
      %s22 = sphi 0, %s26
      %p23 = scmp.ge.s32.totalorder %s22, 4
      %s32 = sphi 0, %s34
      %s35 = sphi 0, %s32
      %s36 = sphi 0, %s35
      %s52 = sphi 0, %s36
      %s58 = sphi 0, %s60
      %s61 = sphi 0, %s58
      %s62 = sphi 0, %s61
      %s78 = sphi 0, %s62
      %s84 = sphi 0, %s86
      %s87 = sphi 0, %s84
      %s88 = sphi 0, %s87
      %s104 = sphi 0, %s88
      %s108 = sphi 0, %s108
      %s110 = sphi 0, %s108
      %s111 = sphi 0, %s110
      %s125 = sphi 0, %s111
      %s129 = sphi 0, %s129
      %s131 = sphi 0, %s129
      %s132 = sphi 0, %s131
      %s146 = sphi 0, %s132
      %s150 = sphi 0, %s150
      %s152 = sphi 0, %s150
      %s153 = sphi 0, %s152
      %s167 = sphi 0, %s153
      %s171 = sphi 0, %s171
      %s173 = sphi 0, %s171
      %s174 = sphi 0, %s173
      %s188 = sphi 0, %s174
      %s192 = sphi 0, %s192
      %s194 = sphi 0, %s192
      %s195 = sphi 0, %s194
      %s209 = sphi 0, %s195
      %s213 = sphi 0, %s213
      %s215 = sphi 0, %s213
      %s216 = sphi 0, %s215
      %s230 = sphi 0, %s216
      %s234 = sphi 0, %s234
      %s236 = sphi 0, %s234
      %s237 = sphi 0, %s236
      %s251 = sphi 0, %s237
      %s255 = sphi 0, %s255
      %s257 = sphi 0, %s255
      %s258 = sphi 0, %s257
      %s272 = sphi 0, %s258
      %s276 = sphi 0, %s276
      %s278 = sphi 0, %s276
      %s279 = sphi 0, %s278
      %s293 = sphi 0, %s279
      %s297 = sphi 0, %s297
      %s299 = sphi 0, %s297
      %s300 = sphi 0, %s299
      %s314 = sphi 0, %s300
      %s320 = sphi 0, %s322
      %s323 = sphi 0, %s320
      %s324 = sphi 0, %s323
      %s340 = sphi 0, %s324
    $region4: #{tpu_custom_call.1} parent=1 // loop_header_branch
      %25 = sbr.rel (%p23) target = $region8
    $region5: #{tpu_custom_call.1} parent=1 // loop_body
      %s27 = ssub.s32 %s22, 1
      %s28 = ssub.s32 %s22, 2
      %s29 = sadd.s32 %s22, 1
      %s30 = ssub.s32 %s22, %s29
      %p31 = scmp.eq.s32.totalorder %s30, 0
      %s33 = sadd.s32 %s32, 1
      %s34 = scalar_select %p31, %s32, %s33
      %p37 = pneg %p31
      %p38 = scmp.eq.s32.totalorder %s22, 1
      %p39 = por %p37, %p38
      %p40 = scmp.ne.s32.totalorder %s32, %s35
      %p41 = scmp.eq.s32.totalorder %s22, 0
      %p42 = por %p40, %p41
      %p43 = scmp.ne.s32.totalorder %s32, %s35
      %p44 = scmp.eq.s32.totalorder %s27, 1
      %p45 = por %p43, %p44
      %p46 = scmp.ne.s32.totalorder %s35, %s36
      %p47 = scmp.eq.s32.totalorder %s27, 0
      %p48 = por %p46, %p47
      %p49 = scmp.ne.s32.totalorder %s35, %s36
      %p50 = scmp.eq.s32.totalorder %s28, 1
      %p51 = por %p49, %p50
      %p53 = scmp.ne.s32.totalorder %s36, %s52
      %p54 = scmp.eq.s32.totalorder %s28, 0
      %p55 = por %p53, %p54
      %s56 = ssub.s32 %s22, %s29
      %p57 = scmp.eq.s32.totalorder %s56, 0
      %s59 = sadd.s32 %s58, 1
      %s60 = scalar_select %p57, %s58, %s59
      %p63 = pneg %p57
      %p64 = scmp.eq.s32.totalorder %s22, 1
      %p65 = por %p63, %p64
      %p66 = scmp.ne.s32.totalorder %s58, %s61
      %p67 = scmp.eq.s32.totalorder %s22, 0
      %p68 = por %p66, %p67
      %p69 = scmp.ne.s32.totalorder %s58, %s61
      %p70 = scmp.eq.s32.totalorder %s27, 1
      %p71 = por %p69, %p70
      %p72 = scmp.ne.s32.totalorder %s61, %s62
      %p73 = scmp.eq.s32.totalorder %s27, 0
      %p74 = por %p72, %p73
      %p75 = scmp.ne.s32.totalorder %s61, %s62
      %p76 = scmp.eq.s32.totalorder %s28, 1
      %p77 = por %p75, %p76
      %p79 = scmp.ne.s32.totalorder %s62, %s78
      %p80 = scmp.eq.s32.totalorder %s28, 0
      %p81 = por %p79, %p80
      %s82 = ssub.s32 %s22, %s29
      %p83 = scmp.eq.s32.totalorder %s82, 0
      %s85 = sadd.s32 %s84, 1
      %s86 = scalar_select %p83, %s84, %s85
      %p89 = pneg %p83
      %p90 = scmp.eq.s32.totalorder %s22, 1
      %p91 = por %p89, %p90
      %p92 = scmp.ne.s32.totalorder %s84, %s87
      %p93 = scmp.eq.s32.totalorder %s22, 0
      %p94 = por %p92, %p93
      %p95 = scmp.ne.s32.totalorder %s84, %s87
      %p96 = scmp.eq.s32.totalorder %s27, 1
      %p97 = por %p95, %p96
      %p98 = scmp.ne.s32.totalorder %s87, %s88
      %p99 = scmp.eq.s32.totalorder %s27, 0
      %p100 = por %p98, %p99
      %p101 = scmp.ne.s32.totalorder %s87, %s88
      %p102 = scmp.eq.s32.totalorder %s28, 1
      %p103 = por %p101, %p102
      %p105 = scmp.ne.s32.totalorder %s88, %s104
      %p106 = scmp.eq.s32.totalorder %s28, 0
      %p107 = por %p105, %p106
      %s109 = sadd.s32 %s108, 1
      %p112 = scmp.eq.s32.totalorder %s22, 1
      %p113 = scmp.ne.s32.totalorder %s108, %s110
      %p114 = scmp.eq.s32.totalorder %s22, 0
      %p115 = por %p113, %p114
      %p116 = scmp.ne.s32.totalorder %s108, %s110
      %p117 = scmp.eq.s32.totalorder %s27, 1
      %p118 = por %p116, %p117
      %p119 = scmp.ne.s32.totalorder %s110, %s111
      %p120 = scmp.eq.s32.totalorder %s27, 0
      %p121 = por %p119, %p120
      %p122 = scmp.ne.s32.totalorder %s110, %s111
      %p123 = scmp.eq.s32.totalorder %s28, 1
      %p124 = por %p122, %p123
      %p126 = scmp.ne.s32.totalorder %s111, %s125
      %p127 = scmp.eq.s32.totalorder %s28, 0
      %p128 = por %p126, %p127
      %s130 = sadd.s32 %s129, 1
      %p133 = scmp.eq.s32.totalorder %s22, 1
      %p134 = scmp.ne.s32.totalorder %s129, %s131
      %p135 = scmp.eq.s32.totalorder %s22, 0
      %p136 = por %p134, %p135
      %p137 = scmp.ne.s32.totalorder %s129, %s131
      %p138 = scmp.eq.s32.totalorder %s27, 1
      %p139 = por %p137, %p138
      %p140 = scmp.ne.s32.totalorder %s131, %s132
      %p141 = scmp.eq.s32.totalorder %s27, 0
      %p142 = por %p140, %p141
      %p143 = scmp.ne.s32.totalorder %s131, %s132
      %p144 = scmp.eq.s32.totalorder %s28, 1
      %p145 = por %p143, %p144
      %p147 = scmp.ne.s32.totalorder %s132, %s146
      %p148 = scmp.eq.s32.totalorder %s28, 0
      %p149 = por %p147, %p148
      %s151 = sadd.s32 %s150, 1
      %p154 = scmp.eq.s32.totalorder %s22, 1
      %p155 = scmp.ne.s32.totalorder %s150, %s152
      %p156 = scmp.eq.s32.totalorder %s22, 0
      %p157 = por %p155, %p156
      %p158 = scmp.ne.s32.totalorder %s150, %s152
      %p159 = scmp.eq.s32.totalorder %s27, 1
      %p160 = por %p158, %p159
      %p161 = scmp.ne.s32.totalorder %s152, %s153
      %p162 = scmp.eq.s32.totalorder %s27, 0
      %p163 = por %p161, %p162
      %p164 = scmp.ne.s32.totalorder %s152, %s153
      %p165 = scmp.eq.s32.totalorder %s28, 1
      %p166 = por %p164, %p165
      %p168 = scmp.ne.s32.totalorder %s153, %s167
      %p169 = scmp.eq.s32.totalorder %s28, 0
      %p170 = por %p168, %p169
      %s172 = sadd.s32 %s171, 1
      %p175 = scmp.eq.s32.totalorder %s22, 1
      %p176 = scmp.ne.s32.totalorder %s171, %s173
      %p177 = scmp.eq.s32.totalorder %s22, 0
      %p178 = por %p176, %p177
      %p179 = scmp.ne.s32.totalorder %s171, %s173
      %p180 = scmp.eq.s32.totalorder %s27, 1
      %p181 = por %p179, %p180
      %p182 = scmp.ne.s32.totalorder %s173, %s174
      %p183 = scmp.eq.s32.totalorder %s27, 0
      %p184 = por %p182, %p183
      %p185 = scmp.ne.s32.totalorder %s173, %s174
      %p186 = scmp.eq.s32.totalorder %s28, 1
      %p187 = por %p185, %p186
      %p189 = scmp.ne.s32.totalorder %s174, %s188
      %p190 = scmp.eq.s32.totalorder %s28, 0
      %p191 = por %p189, %p190
      %s193 = sadd.s32 %s192, 1
      %p196 = scmp.eq.s32.totalorder %s22, 1
      %p197 = scmp.ne.s32.totalorder %s192, %s194
      %p198 = scmp.eq.s32.totalorder %s22, 0
      %p199 = por %p197, %p198
      %p200 = scmp.ne.s32.totalorder %s192, %s194
      %p201 = scmp.eq.s32.totalorder %s27, 1
      %p202 = por %p200, %p201
      %p203 = scmp.ne.s32.totalorder %s194, %s195
      %p204 = scmp.eq.s32.totalorder %s27, 0
      %p205 = por %p203, %p204
      %p206 = scmp.ne.s32.totalorder %s194, %s195
      %p207 = scmp.eq.s32.totalorder %s28, 1
      %p208 = por %p206, %p207
      %p210 = scmp.ne.s32.totalorder %s195, %s209
      %p211 = scmp.eq.s32.totalorder %s28, 0
      %p212 = por %p210, %p211
      %s214 = sadd.s32 %s213, 1
      %p217 = scmp.eq.s32.totalorder %s22, 1
      %p218 = scmp.ne.s32.totalorder %s213, %s215
      %p219 = scmp.eq.s32.totalorder %s22, 0
      %p220 = por %p218, %p219
      %p221 = scmp.ne.s32.totalorder %s213, %s215
      %p222 = scmp.eq.s32.totalorder %s27, 1
      %p223 = por %p221, %p222
      %p224 = scmp.ne.s32.totalorder %s215, %s216
      %p225 = scmp.eq.s32.totalorder %s27, 0
      %p226 = por %p224, %p225
      %p227 = scmp.ne.s32.totalorder %s215, %s216
      %p228 = scmp.eq.s32.totalorder %s28, 1
      %p229 = por %p227, %p228
      %p231 = scmp.ne.s32.totalorder %s216, %s230
      %p232 = scmp.eq.s32.totalorder %s28, 0
      %p233 = por %p231, %p232
      %s235 = sadd.s32 %s234, 1
      %p238 = scmp.eq.s32.totalorder %s22, 1
      %p239 = scmp.ne.s32.totalorder %s234, %s236
      %p240 = scmp.eq.s32.totalorder %s22, 0
      %p241 = por %p239, %p240
      %p242 = scmp.ne.s32.totalorder %s234, %s236
      %p243 = scmp.eq.s32.totalorder %s27, 1
      %p244 = por %p242, %p243
      %p245 = scmp.ne.s32.totalorder %s236, %s237
      %p246 = scmp.eq.s32.totalorder %s27, 0
      %p247 = por %p245, %p246
      %p248 = scmp.ne.s32.totalorder %s236, %s237
      %p249 = scmp.eq.s32.totalorder %s28, 1
      %p250 = por %p248, %p249
      %p252 = scmp.ne.s32.totalorder %s237, %s251
      %p253 = scmp.eq.s32.totalorder %s28, 0
      %p254 = por %p252, %p253
      %s256 = sadd.s32 %s255, 1
      %p259 = scmp.eq.s32.totalorder %s22, 1
      %p260 = scmp.ne.s32.totalorder %s255, %s257
      %p261 = scmp.eq.s32.totalorder %s22, 0
      %p262 = por %p260, %p261
      %p263 = scmp.ne.s32.totalorder %s255, %s257
      %p264 = scmp.eq.s32.totalorder %s27, 1
      %p265 = por %p263, %p264
      %p266 = scmp.ne.s32.totalorder %s257, %s258
      %p267 = scmp.eq.s32.totalorder %s27, 0
      %p268 = por %p266, %p267
      %p269 = scmp.ne.s32.totalorder %s257, %s258
      %p270 = scmp.eq.s32.totalorder %s28, 1
      %p271 = por %p269, %p270
      %p273 = scmp.ne.s32.totalorder %s258, %s272
      %p274 = scmp.eq.s32.totalorder %s28, 0
      %p275 = por %p273, %p274
      %s277 = sadd.s32 %s276, 1
      %p280 = scmp.eq.s32.totalorder %s22, 1
      %p281 = scmp.ne.s32.totalorder %s276, %s278
      %p282 = scmp.eq.s32.totalorder %s22, 0
      %p283 = por %p281, %p282
      %p284 = scmp.ne.s32.totalorder %s276, %s278
      %p285 = scmp.eq.s32.totalorder %s27, 1
      %p286 = por %p284, %p285
      %p287 = scmp.ne.s32.totalorder %s278, %s279
      %p288 = scmp.eq.s32.totalorder %s27, 0
      %p289 = por %p287, %p288
      %p290 = scmp.ne.s32.totalorder %s278, %s279
      %p291 = scmp.eq.s32.totalorder %s28, 1
      %p292 = por %p290, %p291
      %p294 = scmp.ne.s32.totalorder %s279, %s293
      %p295 = scmp.eq.s32.totalorder %s28, 0
      %p296 = por %p294, %p295
      %s298 = sadd.s32 %s297, 1
      %p301 = scmp.eq.s32.totalorder %s22, 1
      %p302 = scmp.ne.s32.totalorder %s297, %s299
      %p303 = scmp.eq.s32.totalorder %s22, 0
      %p304 = por %p302, %p303
      %p305 = scmp.ne.s32.totalorder %s297, %s299
      %p306 = scmp.eq.s32.totalorder %s27, 1
      %p307 = por %p305, %p306
      %p308 = scmp.ne.s32.totalorder %s299, %s300
      %p309 = scmp.eq.s32.totalorder %s27, 0
      %p310 = por %p308, %p309
      %p311 = scmp.ne.s32.totalorder %s299, %s300
      %p312 = scmp.eq.s32.totalorder %s28, 1
      %p313 = por %p311, %p312
      %p315 = scmp.ne.s32.totalorder %s300, %s314
      %p316 = scmp.eq.s32.totalorder %s28, 0
      %p317 = por %p315, %p316
      %s318 = ssub.s32 %s22, %s29
      %p319 = scmp.eq.s32.totalorder %s318, 0
      %s321 = sadd.s32 %s320, 1
      %s322 = scalar_select %p319, %s320, %s321
      %p325 = pneg %p319
      %p326 = scmp.eq.s32.totalorder %s22, 1
      %p327 = por %p325, %p326
      %p328 = scmp.ne.s32.totalorder %s320, %s323
      %p329 = scmp.eq.s32.totalorder %s22, 0
      %p330 = por %p328, %p329
      %p331 = scmp.ne.s32.totalorder %s320, %s323
      %p332 = scmp.eq.s32.totalorder %s27, 1
      %p333 = por %p331, %p332
      %p334 = scmp.ne.s32.totalorder %s323, %s324
      %p335 = scmp.eq.s32.totalorder %s27, 0
      %p336 = por %p334, %p335
      %p337 = scmp.ne.s32.totalorder %s323, %s324
      %p338 = scmp.eq.s32.totalorder %s28, 1
      %p339 = por %p337, %p338
      %p341 = scmp.ne.s32.totalorder %s324, %s340
      %p342 = scmp.eq.s32.totalorder %s28, 0
      %p343 = por %p341, %p342
      %p344 = scmp.le.s32.totalorder 1, %s22
      %p345 = scmp.lt.s32.totalorder %s22, 3
      %p346 = pnand %p344, %p345
      %p347 = pneg %p346
      // Predicated region
      $region9: #{tpu_custom_call.1} parent=5 // pred_check
        _
      $region10: #{tpu_custom_call.1} parent=5 // pred_check_branch
        %349 = sbr.rel (%p346) target = $region12
      $region11: #{tpu_custom_call.1} parent=5 // pred_region
        %s350 = ssub.s32 %s22, 1
        // Predicated region
        $region13: #{tpu_custom_call.1} parent=11 // pred_check
          %p351 = pneg %p121
        $region14: #{tpu_custom_call.1} parent=11 // pred_check_branch
          %353 = sbr.rel (%p351) target = $region16
        $region15: #{tpu_custom_call.1} parent=11 // pred_region
          _
        $region16: #{tpu_custom_call.1} parent=11 // pred_fallthru
          _
        // Predicated region
        $region17: #{tpu_custom_call.1} parent=11 // pred_check
          %p354 = pneg %p142
        $region18: #{tpu_custom_call.1} parent=11 // pred_check_branch
          %356 = sbr.rel (%p354) target = $region20
        $region19: #{tpu_custom_call.1} parent=11 // pred_region
          _
        $region20: #{tpu_custom_call.1} parent=11 // pred_fallthru
          _
        // Predicated region
        $region21: #{tpu_custom_call.1} parent=11 // pred_check
          %p357 = pneg %p163
        $region22: #{tpu_custom_call.1} parent=11 // pred_check_branch
          %359 = sbr.rel (%p357) target = $region24
        $region23: #{tpu_custom_call.1} parent=11 // pred_region
          _
        $region24: #{tpu_custom_call.1} parent=11 // pred_fallthru
          _
        // Predicated region
        $region25: #{tpu_custom_call.1} parent=11 // pred_check
          %p360 = pneg %p184
        $region26: #{tpu_custom_call.1} parent=11 // pred_check_branch
          %362 = sbr.rel (%p360) target = $region28
        $region27: #{tpu_custom_call.1} parent=11 // pred_region
          _
        $region28: #{tpu_custom_call.1} parent=11 // pred_fallthru
          _
        // Predicated region
        $region29: #{tpu_custom_call.1} parent=11 // pred_check
          %p363 = pneg %p205
        $region30: #{tpu_custom_call.1} parent=11 // pred_check_branch
          %365 = sbr.rel (%p363) target = $region32
        $region31: #{tpu_custom_call.1} parent=11 // pred_region
          _
        $region32: #{tpu_custom_call.1} parent=11 // pred_fallthru
          _
        // Predicated region
        $region33: #{tpu_custom_call.1} parent=11 // pred_check
          %p366 = pneg %p226
        $region34: #{tpu_custom_call.1} parent=11 // pred_check_branch
          %368 = sbr.rel (%p366) target = $region36
        $region35: #{tpu_custom_call.1} parent=11 // pred_region
          _
        $region36: #{tpu_custom_call.1} parent=11 // pred_fallthru
          _
        // Predicated region
        $region37: #{tpu_custom_call.1} parent=11 // pred_check
          %p369 = pneg %p247
        $region38: #{tpu_custom_call.1} parent=11 // pred_check_branch
          %371 = sbr.rel (%p369) target = $region40
        $region39: #{tpu_custom_call.1} parent=11 // pred_region
          _
        $region40: #{tpu_custom_call.1} parent=11 // pred_fallthru
          _
        // Predicated region
        $region41: #{tpu_custom_call.1} parent=11 // pred_check
          %p372 = pneg %p268
        $region42: #{tpu_custom_call.1} parent=11 // pred_check_branch
          %374 = sbr.rel (%p372) target = $region44
        $region43: #{tpu_custom_call.1} parent=11 // pred_region
          _
        $region44: #{tpu_custom_call.1} parent=11 // pred_fallthru
          _
        // Predicated region
        $region45: #{tpu_custom_call.1} parent=11 // pred_check
          %p375 = pneg %p289
        $region46: #{tpu_custom_call.1} parent=11 // pred_check_branch
          %377 = sbr.rel (%p375) target = $region48
        $region47: #{tpu_custom_call.1} parent=11 // pred_region
          _
        $region48: #{tpu_custom_call.1} parent=11 // pred_fallthru
          _
        // Predicated region
        $region49: #{tpu_custom_call.1} parent=11 // pred_check
          %p378 = pneg %p310
        $region50: #{tpu_custom_call.1} parent=11 // pred_check_branch
          %380 = sbr.rel (%p378) target = $region52
        $region51: #{tpu_custom_call.1} parent=11 // pred_region
          _
        $region52: #{tpu_custom_call.1} parent=11 // pred_fallthru
          _
      $region12: #{tpu_custom_call.1} parent=5 // pred_fallthru
        _
      %p381 = scmp.lt.s32.totalorder %s22, 2
      // Predicated region
      $region53: #{tpu_custom_call.1} parent=5 // pred_check
        %p382 = pneg %p381
      $region54: #{tpu_custom_call.1} parent=5 // pred_check_branch
        %384 = sbr.rel (%p382) target = $region56
      $region55: #{tpu_custom_call.1} parent=5 // pred_region
        // Predicated region
        $region57: #{tpu_custom_call.1} parent=55 // pred_check
          %p385 = pneg %p42
        $region58: #{tpu_custom_call.1} parent=55 // pred_check_branch
          %387 = sbr.rel (%p385) target = $region60
        $region59: #{tpu_custom_call.1} parent=55 // pred_region
          %p388 = scmp.lt.s32.totalorder %s22, 1
          %s389 = scalar_select %p388, %s22, 1
          %s390 = smul.addr %s389, 8
          %s391 = scalar_lea.vmem %s0, %s390
        $region60: #{tpu_custom_call.1} parent=55 // pred_fallthru
          _
        // Predicated region
        $region61: #{tpu_custom_call.1} parent=55 // pred_check
          %p392 = pneg %p68
        $region62: #{tpu_custom_call.1} parent=55 // pred_check_branch
          %394 = sbr.rel (%p392) target = $region64
        $region63: #{tpu_custom_call.1} parent=55 // pred_region
          %p395 = scmp.lt.s32.totalorder %s22, 1
          %s396 = scalar_select %p395, %s22, 1
          %s397 = smul.addr %s396, 8
          %s398 = smul.addr %s397, 4
          %s399 = scalar_lea.vmem %s1, %s398
        $region64: #{tpu_custom_call.1} parent=55 // pred_fallthru
          _
        // Predicated region
        $region65: #{tpu_custom_call.1} parent=55 // pred_check
          %p400 = pneg %p94
        $region66: #{tpu_custom_call.1} parent=55 // pred_check_branch
          %402 = sbr.rel (%p400) target = $region68
        $region67: #{tpu_custom_call.1} parent=55 // pred_region
          %p403 = scmp.lt.s32.totalorder %s22, 1
          %s404 = scalar_select %p403, %s22, 1
          %s405 = smul.addr %s404, 8
          %s406 = scalar_lea.vmem %s2, %s405
        $region68: #{tpu_custom_call.1} parent=55 // pred_fallthru
          _
      $region56: #{tpu_custom_call.1} parent=5 // pred_fallthru
        _
      %p407 = scmp.le.s32.totalorder 1, %s22
      %p408 = scmp.lt.s32.totalorder %s22, 3
      %p409 = pnand %p407, %p408
      %p410 = pneg %p409
      // Predicated region
      $region69: #{tpu_custom_call.1} parent=5 // pred_check
        _
      $region70: #{tpu_custom_call.1} parent=5 // pred_check_branch
        %412 = sbr.rel (%p409) target = $region72
      $region71: #{tpu_custom_call.1} parent=5 // pred_region
        %s413 = ssub.s32 %s22, 1
        %p414 = scmp.lt.s32.totalorder %s27, 1
        %s415 = scalar_select %p414, %s27, 1
        %s416 = smul.addr %s415, 8
        %s417 = scalar_lea.vmem %s0, %s416
        %p418 = pneg %p48
        %p419 = pneg %p45
        %p420 = scmp.lt.s32.totalorder %s27, 1
        %s421 = scalar_select %p420, %s27, 1
        %s422 = smul.addr %s421, 8
        %s423 = smul.addr %s422, 4
        %s424 = scalar_lea.vmem %s1, %s423
        %p425 = pneg %p74
        %p426 = pneg %p71
        %p427 = scmp.lt.s32.totalorder %s27, 1
        %s428 = scalar_select %p427, %s27, 1
        %s429 = smul.addr %s428, 8
        %s430 = scalar_lea.vmem %s2, %s429
        %p431 = pneg %p100
        %p432 = pneg %p97
        %p433 = pneg %p121
        %p434 = pneg %p118
        %p435 = pneg %p142
        %p436 = pneg %p139
        %p437 = pneg %p163
        %p438 = pneg %p160
        %p439 = pneg %p184
        %p440 = pneg %p181
        %p441 = pneg %p205
        %p442 = pneg %p202
        %p443 = pneg %p226
        %p444 = pneg %p223
        %p445 = pneg %p247
        %p446 = pneg %p244
        %p447 = pneg %p268
        %p448 = pneg %p265
        %p449 = pneg %p289
        %p450 = pneg %p286
        %p451 = pneg %p310
        %p452 = pneg %p307
        %p453 = pneg %p336
        %p454 = pneg %p333
        %s455 = sand.u32 %s323, 1
        %s456 = scalar_lea.sflag [#allocation3], %s455
        %s457 = sand.u32 %s323, 1
        %s458 = scalar_lea.vmem [#allocation2], %s457
        %p459 = scmp.lt.s32.totalorder %s27, 1
        %s460 = scalar_select %p459, %s27, 1
        %s461 = smul.addr %s460, 8
        %s462 = scalar_lea.vmem %s0, %s461
        %p463 = scmp.lt.s32.totalorder %s27, 1
        %s464 = scalar_select %p463, %s27, 1
        %s465 = smul.addr %s464, 8
        %s466 = smul.addr %s465, 4
        %s467 = scalar_lea.vmem %s1, %s466
        %p468 = scmp.lt.s32.totalorder %s27, 1
        %s469 = scalar_select %p468, %s27, 1
        %s470 = smul.addr %s469, 8
        %s471 = scalar_lea.vmem %s2, %s470
        %v473 = vld [vmem:[%s462] sm:$0xff]
        %v474 = vpack.c.bf16 %v473, %v473
        %v475 = vld [vmem:[%s3] sm:$0x3]
        %v476 = vld [vmem:[%s4] sm:$0x1]
        %v478 = vperm.slane %v476, 0
        %vm480 = vcmask 31744
        %v482 = vsel %vm480, %v474, 0
        %vm484 = vcmask 1041408
        %v486 = vsel %vm484, %v475, 0
        %488 = vmatpush.bf16.msra.mxu0 0
        %489 = vmatpush.bf16.msra.mxu0 0
        %490 = vmatpush.bf16.msra.mxu0 0
        %491 = vmatpush.bf16.msra.mxu0 0
        %492 = vmatpush.bf16.msra.mxu0 0
        %493 = vmatpush.bf16.msra.mxu0 0
        %494 = vmatpush.bf16.msra.mxu0 0
        %495 = vmatpush.bf16.msra.mxu0 %v486
        %496 = vmatmul.bf16.gmra.mxu0 %v482
        %v497 = vpop.f32.mrf.mxu0
        %v498 = vadd.f32 %v478, %v497
        %v499 = vpop.f32.mrf.mxu0
        %500 = vdwg.mxu0
        %v501 = vmax.f32 %v498, 0.0
        %v502 = vpack.c.bf16 %v501, %v501
        %v503 = vld [vmem:[%s5] sm:$0xf]
        %v504 = vld [vmem:[%s5 + $0x4] sm:$0xf]
        %v505 = vld [vmem:[%s5 + $0x8] sm:$0xf]
        %v506 = vld [vmem:[%s5 + $0xc] sm:$0xf]
        %v511 = vunpack.c.l.b16 %v503
        %v512 = vunpack.c.l.b16 %v504
        %v513 = vunpack.c.l.b16 %v505
        %v514 = vunpack.c.l.b16 %v506
        %v515 = vpack.c.b16 %v512, %v511
        %v516 = vpack.c.b16 %v514, %v513
        %vm519 = vcmask 261120
        %v521 = vsel %vm519, %v502, 0
        %523 = vmatpush.bf16.msra.mxu0 0
        %524 = vmatpush.bf16.msra.mxu0 0
        %525 = vmatpush.bf16.msra.mxu0 0
        %526 = vmatpush.bf16.msra.mxu0 0
        %527 = vmatpush.bf16.msra.mxu0 0
        %528 = vmatpush.bf16.msra.mxu0 0
        %529 = vmatpush.bf16.msra.mxu0 %v516
        %530 = vmatpush.bf16.msra.mxu0 %v515
        %531 = vmatmul.bf16.gmra.mxu0 %v521
        %v532 = vpop.f32.mrf.mxu0
        %v533 = vadd.f32 0.0, %v532
        %v534 = vpop.f32.mrf.mxu0
        %535 = vdwg.mxu0
        %v536 = vld [vmem:[%s6] sm:$0x1]
        %v538 = vperm.slane %v536, 0
        %v540 = vadd.f32 %v533, %v538
        %v542 = vrot.slane %v540, 1
        %v543 = vrot.slane %v540, 2
        %v544 = vrot.slane %v540, 3
        %v545 = vrot.slane %v540, 4
        %v546 = vrot.slane %v540, 5
        %v547 = vrot.slane %v540, 6
        %v548 = vrot.slane %v540, 7
        %v549 = vperm.slane %v540, 0
        %v550 = vperm.slane %v542, 0
        %v551 = vperm.slane %v543, 0
        %v552 = vperm.slane %v544, 0
        %v553 = vperm.slane %v545, 0
        %v554 = vperm.slane %v546, 0
        %v555 = vperm.slane %v547, 0
        %v556 = vperm.slane %v548, 0
        %566 = vrot.lane.b32.xlu0 %v533, 96
        %v567 = vpop.permute.xlu0 %566
        %v569 = vadd.f32 %v549, %v567
        %v570 = vadd.f32 %v550, %v567
        %v571 = vadd.f32 %v551, %v567
        %v572 = vadd.f32 %v552, %v567
        %v573 = vadd.f32 %v553, %v567
        %v574 = vadd.f32 %v554, %v567
        %v575 = vadd.f32 %v555, %v567
        %v576 = vadd.f32 %v556, %v567
        %v577 = vmax.f32 %v569, 0.0
        %v578 = vmax.f32 %v570, 0.0
        %v579 = vmax.f32 %v571, 0.0
        %v580 = vmax.f32 %v572, 0.0
        %v581 = vmax.f32 %v573, 0.0
        %v582 = vmax.f32 %v574, 0.0
        %v583 = vmax.f32 %v575, 0.0
        %v584 = vmax.f32 %v576, 0.0
        %v585 = vpack.c.bf16 %v577, %v577
        %v586 = vpack.c.bf16 %v578, %v578
        %v587 = vpack.c.bf16 %v579, %v579
        %v588 = vpack.c.bf16 %v580, %v580
        %v589 = vpack.c.bf16 %v581, %v581
        %v590 = vpack.c.bf16 %v582, %v582
        %v591 = vpack.c.bf16 %v583, %v583
        %v592 = vpack.c.bf16 %v584, %v584
        %v593 = vld [vmem:[%s7] sm:$0xf]
        %v594 = vld [vmem:[%s7 + $0x4] sm:$0xf]
        %v595 = vld [vmem:[%s7 + $0x8] sm:$0xf]
        %v596 = vld [vmem:[%s7 + $0xc] sm:$0xf]
        %v597 = vld [vmem:[%s8] sm:$0x1]
        %v599 = vperm.slane %v597, 0
        %v609 = vunpack.c.l.b16 %v585
        %v610 = vunpack.c.l.b16 %v586
        %v611 = vunpack.c.l.b16 %v587
        %v612 = vunpack.c.l.b16 %v588
        %v613 = vunpack.c.l.b16 %v589
        %v614 = vunpack.c.l.b16 %v590
        %v615 = vunpack.c.l.b16 %v591
        %v616 = vunpack.c.l.b16 %v592
        %v617 = vpack.c.b16 %v610, %v609
        %v618 = vpack.c.b16 %v612, %v611
        %v619 = vpack.c.b16 %v614, %v613
        %v620 = vpack.c.b16 %v616, %v615
        %v625 = vunpack.c.l.b16 %v593
        %v626 = vunpack.c.l.b16 %v594
        %v627 = vunpack.c.l.b16 %v595
        %v628 = vunpack.c.l.b16 %v596
        %v629 = vpack.c.b16 %v626, %v625
        %v630 = vpack.c.b16 %v628, %v627
        %v634 = vsel %vm519, %v617, 0
        %v637 = vsel %vm519, %v618, 0
        %v640 = vsel %vm519, %v619, 0
        %v643 = vsel %vm519, %v620, 0
        %645 = vmatpush.bf16.msra.mxu0 0
        %646 = vmatpush.bf16.msra.mxu0 0
        %647 = vmatpush.bf16.msra.mxu0 0
        %648 = vmatpush.bf16.msra.mxu0 0
        %649 = vmatpush.bf16.msra.mxu0 0
        %650 = vmatpush.bf16.msra.mxu0 0
        %651 = vmatpush.bf16.msra.mxu0 %v630
        %652 = vmatpush.bf16.msra.mxu0 %v629
        %653 = vmatmul.bf16.gmra.mxu0 %v634
        %v654 = vpop.f32.mrf.mxu0
        %v655 = vadd.f32 %v599, %v654
        %v656 = vpop.f32.mrf.mxu0
        %v657 = vadd.f32 %v599, %v656
        %658 = vmatmul.bf16.gmra.mxu0 %v637
        %v659 = vpop.f32.mrf.mxu0
        %v660 = vadd.f32 %v599, %v659
        %v661 = vpop.f32.mrf.mxu0
        %v662 = vadd.f32 %v599, %v661
        %663 = vmatmul.bf16.gmra.mxu0 %v640
        %v664 = vpop.f32.mrf.mxu0
        %v665 = vadd.f32 %v599, %v664
        %v666 = vpop.f32.mrf.mxu0
        %v667 = vadd.f32 %v599, %v666
        %668 = vmatmul.bf16.gmra.mxu0 %v643
        %v669 = vpop.f32.mrf.mxu0
        %v670 = vadd.f32 %v599, %v669
        %v671 = vpop.f32.mrf.mxu0
        %v672 = vadd.f32 %v599, %v671
        %673 = vdwg.mxu0
        %v674 = vld [vmem:[%s467] sm:$0xf]
        %v675 = vld [vmem:[%s467 + $0x4] sm:$0xf]
        %v676 = vld [vmem:[%s467 + $0x8] sm:$0xf]
        %v677 = vld [vmem:[%s467 + $0xc] sm:$0xf]
        %v678 = vld [vmem:[%s467 + $0x10] sm:$0xf]
        %v679 = vld [vmem:[%s467 + $0x14] sm:$0xf]
        %v680 = vld [vmem:[%s467 + $0x18] sm:$0xf]
        %v681 = vld [vmem:[%s467 + $0x1c] sm:$0xf]
        %v682 = vunpack.c.l.bf16 %v674
        %v683 = vunpack.c.l.bf16 %v675
        %v684 = vunpack.c.l.bf16 %v676
        %v685 = vunpack.c.l.bf16 %v677
        %v686 = vunpack.c.l.bf16 %v678
        %v687 = vunpack.c.l.bf16 %v679
        %v688 = vunpack.c.l.bf16 %v680
        %v689 = vunpack.c.l.bf16 %v681
        %691 = vset.pattern.permute.xlu0 0
        %692 = vperm.xlu0 %691, %v682
        %v693 = vpop.permute.xlu0 %692
        %696 = vset.pattern.permute.xlu0 0
        %697 = vperm.xlu0 %696, %v683
        %v698 = vpop.permute.xlu0 %697
        %701 = vset.pattern.permute.xlu0 0
        %702 = vperm.xlu0 %701, %v684
        %v703 = vpop.permute.xlu0 %702
        %706 = vset.pattern.permute.xlu0 0
        %707 = vperm.xlu0 %706, %v685
        %v708 = vpop.permute.xlu0 %707
        %711 = vset.pattern.permute.xlu0 0
        %712 = vperm.xlu0 %711, %v686
        %v713 = vpop.permute.xlu0 %712
        %716 = vset.pattern.permute.xlu0 0
        %717 = vperm.xlu0 %716, %v687
        %v718 = vpop.permute.xlu0 %717
        %721 = vset.pattern.permute.xlu0 0
        %722 = vperm.xlu0 %721, %v688
        %v723 = vpop.permute.xlu0 %722
        %726 = vset.pattern.permute.xlu0 0
        %727 = vperm.xlu0 %726, %v689
        %v728 = vpop.permute.xlu0 %727
        %v730 = vadd.f32 %v655, %v693
        %v731 = vadd.f32 %v657, %v698
        %v732 = vadd.f32 %v660, %v703
        %v733 = vadd.f32 %v662, %v708
        %v734 = vadd.f32 %v665, %v713
        %v735 = vadd.f32 %v667, %v718
        %v736 = vadd.f32 %v670, %v723
        %v737 = vadd.f32 %v672, %v728
        %v738 = vsel %vm519, %v730, -inf
        %v739 = vrot.slane %v738, 4
        %v740 = vmax.f32 %v738, %v739
        %v741 = vrot.slane %v740, 2
        %v742 = vmax.f32 %v740, %v741
        %v743 = vrot.slane %v742, 1
        %v744 = vmax.f32 %v742, %v743
        %v745 = vsel %vm519, %v731, -inf
        %v746 = vrot.slane %v745, 4
        %v747 = vmax.f32 %v745, %v746
        %v748 = vrot.slane %v747, 2
        %v749 = vmax.f32 %v747, %v748
        %v750 = vrot.slane %v749, 1
        %v751 = vmax.f32 %v749, %v750
        %v752 = vsel %vm519, %v732, -inf
        %v753 = vrot.slane %v752, 4
        %v754 = vmax.f32 %v752, %v753
        %v755 = vrot.slane %v754, 2
        %v756 = vmax.f32 %v754, %v755
        %v757 = vrot.slane %v756, 1
        %v758 = vmax.f32 %v756, %v757
        %v759 = vsel %vm519, %v733, -inf
        %v760 = vrot.slane %v759, 4
        %v761 = vmax.f32 %v759, %v760
        %v762 = vrot.slane %v761, 2
        %v763 = vmax.f32 %v761, %v762
        %v764 = vrot.slane %v763, 1
        %v765 = vmax.f32 %v763, %v764
        %v766 = vsel %vm519, %v734, -inf
        %v767 = vrot.slane %v766, 4
        %v768 = vmax.f32 %v766, %v767
        %v769 = vrot.slane %v768, 2
        %v770 = vmax.f32 %v768, %v769
        %v771 = vrot.slane %v770, 1
        %v772 = vmax.f32 %v770, %v771
        %v773 = vsel %vm519, %v735, -inf
        %v774 = vrot.slane %v773, 4
        %v775 = vmax.f32 %v773, %v774
        %v776 = vrot.slane %v775, 2
        %v777 = vmax.f32 %v775, %v776
        %v778 = vrot.slane %v777, 1
        %v779 = vmax.f32 %v777, %v778
        %v780 = vsel %vm519, %v736, -inf
        %v781 = vrot.slane %v780, 4
        %v782 = vmax.f32 %v780, %v781
        %v783 = vrot.slane %v782, 2
        %v784 = vmax.f32 %v782, %v783
        %v785 = vrot.slane %v784, 1
        %v786 = vmax.f32 %v784, %v785
        %v787 = vsel %vm519, %v737, -inf
        %v788 = vrot.slane %v787, 4
        %v789 = vmax.f32 %v787, %v788
        %v790 = vrot.slane %v789, 2
        %v791 = vmax.f32 %v789, %v790
        %v792 = vrot.slane %v791, 1
        %v793 = vmax.f32 %v791, %v792
        %v794 = vld [vmem:[%s471] sm:$0xff]
        %vm795 = vcmp.gt.f32.partialorder %v794, 0.5
        %v796 = vsel %vm795, 1, 0
        %797 = vset.pattern.permute.xlu0 0
        %798 = vperm.xlu0 %797, %v796
        %v799 = vpop.permute.xlu0 %798
        %vm800 = vcmp.eq.s32.totalorder %v799, 1
        %vm809 = vcmask 1041409
        %v810 = vsel %vm809, %v751, %v744
        %vm811 = vcmask 1042434
        %v812 = vsel %vm811, %v758, %v810
        %vm813 = vcmask 1043459
        %v814 = vsel %vm813, %v765, %v812
        %vm815 = vcmask 1044484
        %v816 = vsel %vm815, %v772, %v814
        %vm817 = vcmask 1045509
        %v818 = vsel %vm817, %v779, %v816
        %vm819 = vcmask 1046534
        %v820 = vsel %vm819, %v786, %v818
        %vm821 = vcmask 1047559
        %v822 = vsel %vm821, %v793, %v820
        %v824 = vsel %vm800, %v822, 0.0
        %v825 = vsel %vm519, %v824, -inf
        %v826 = vrot.slane %v825, 4
        %v827 = vmax.f32 %v825, %v826
        %v828 = vrot.slane %v827, 2
        %v829 = vmax.f32 %v827, %v828
        %v830 = vrot.slane %v829, 1
        %v831 = vmax.f32 %v829, %v830
        %v832 = vpack.c.bf16 %v831, %v831
        %v833 = vld [vmem:[%s9] sm:$0xf]
        %v834 = vld [vmem:[%s9 + $0x4] sm:$0xf]
        %v835 = vld [vmem:[%s9 + $0x8] sm:$0xf]
        %v836 = vld [vmem:[%s9 + $0xc] sm:$0xf]
        %v837 = vld [vmem:[%s10] sm:$0x1]
        %v842 = vunpack.c.l.b16 %v833
        %v843 = vunpack.c.l.b16 %v834
        %v844 = vunpack.c.l.b16 %v835
        %v845 = vunpack.c.l.b16 %v836
        %v846 = vpack.c.b16 %v843, %v842
        %v847 = vpack.c.b16 %v845, %v844
        %v851 = vsel %vm519, %v832, 0
        %853 = vmatpush.bf16.msra.mxu0 0
        %854 = vmatpush.bf16.msra.mxu0 0
        %855 = vmatpush.bf16.msra.mxu0 0
        %856 = vmatpush.bf16.msra.mxu0 0
        %857 = vmatpush.bf16.msra.mxu0 0
        %858 = vmatpush.bf16.msra.mxu0 0
        %859 = vmatpush.bf16.msra.mxu0 %v847
        %860 = vmatpush.bf16.msra.mxu0 %v846
        %861 = vmatmul.bf16.gmra.mxu0 %v851
        %v862 = vpop.f32.mrf.mxu0
        %v863 = vadd.f32 %v837, %v862
        %v864 = vpop.f32.mrf.mxu0
        %865 = vdwg.mxu0
        %v866 = vmax.f32 %v863, 0.0
        %v867 = vpack.c.bf16 %v866, %v866
        %v868 = vld [vmem:[%s11] sm:$0xf]
        %v869 = vld [vmem:[%s11 + $0x4] sm:$0xf]
        %v870 = vld [vmem:[%s11 + $0x8] sm:$0xf]
        %v871 = vld [vmem:[%s11 + $0xc] sm:$0xf]
        %v872 = vld [vmem:[%s11 + $0x10] sm:$0xf]
        %v873 = vld [vmem:[%s11 + $0x14] sm:$0xf]
        %v874 = vld [vmem:[%s11 + $0x18] sm:$0xf]
        %v875 = vld [vmem:[%s11 + $0x1c] sm:$0xf]
        %v876 = vld [vmem:[%s12] sm:$0x1]
        %v885 = vunpack.c.l.b16 %v868
        %v886 = vunpack.c.l.b16 %v869
        %v887 = vunpack.c.l.b16 %v870
        %v888 = vunpack.c.l.b16 %v871
        %v889 = vunpack.c.l.b16 %v872
        %v890 = vunpack.c.l.b16 %v873
        %v891 = vunpack.c.l.b16 %v874
        %v892 = vunpack.c.l.b16 %v875
        %v893 = vpack.c.b16 %v886, %v885
        %v894 = vpack.c.b16 %v888, %v887
        %v895 = vpack.c.b16 %v890, %v889
        %v896 = vpack.c.b16 %v892, %v891
        %vm901 = vcmask 523264
        %v903 = vsel %vm901, %v867, 0
        %905 = vmatpush.bf16.msra.mxu0 0
        %906 = vmatpush.bf16.msra.mxu0 0
        %907 = vmatpush.bf16.msra.mxu0 0
        %908 = vmatpush.bf16.msra.mxu0 0
        %909 = vmatpush.bf16.msra.mxu0 %v896
        %910 = vmatpush.bf16.msra.mxu0 %v895
        %911 = vmatpush.bf16.msra.mxu0 %v894
        %912 = vmatpush.bf16.msra.mxu0 %v893
        %913 = vmatmul.bf16.gmra.mxu0 %v903
        %v914 = vpop.f32.mrf.mxu0
        %v915 = vadd.f32 %v876, %v914
        %v916 = vpop.f32.mrf.mxu0
        %917 = vdwg.mxu0
        %vm918 = vcmask 1040384
        %v919 = vsel %vm918, %v915, -inf
        %920 = vmax.xlane.f32.xlu0 %v919
        %v921 = vpop.xlane.xlu0 %920
        %v922 = vsub.f32 %v915, %v921
        %v923 = vmul.f32 %v922, 1.442695
        %v924 = vpow.pop %v923
        %v925 = vsel %vm918, %v924, 0.0
        %926 = vadd.xlane.f32.xlu0 %v925
        %v927 = vpop.xlane.xlu0 %926
        %v928 = vlog2.pop %v927
        %v929 = vmul.f32 %v928, 0.6931472
        %v930 = vsub.f32 %v922, %v929
        %931 = vst [vmem:[%s458] sm:$0x1] %v930
        %s932 = sand.u32 %s323, 1
        %s933 = scalar_lea.sflag [#allocation3], %s932
        %s934 = sand.u32 %s323, 1
        %s935 = scalar_lea.vmem [#allocation2], %s934
        // Predicated region
        $region73: #{tpu_custom_call.1} parent=71 // pred_check
          %p936 = pneg %p333
        $region74: #{tpu_custom_call.1} parent=71 // pred_check_branch
          %938 = sbr.rel (%p936) target = $region76
        $region75: #{tpu_custom_call.1} parent=71 // pred_region
          %940 = vsyncadd %s933, 0
          %s941 = scalar_lea.hbm %s13, %s27
          %s943 = sshll.u32 %s935, 4
          %s944 = int_to_ptr.vmem [resolvable:$true] %s943
          %s945 = sshll.u32 %s941, 4
          %s946 = int_to_ptr.hbm [resolvable:$true] %s945
          %948 = dma.vmem_to_hbm [thread:$0]  %s944, 16, %s946, %s933
        $region76: #{tpu_custom_call.1} parent=71 // pred_fallthru
          _
      $region72: #{tpu_custom_call.1} parent=5 // pred_fallthru
        _
      %p949 = scmp.le.s32.totalorder 2, %s22
      // Predicated region
      $region77: #{tpu_custom_call.1} parent=5 // pred_check
        %p950 = pneg %p949
      $region78: #{tpu_custom_call.1} parent=5 // pred_check_branch
        %952 = sbr.rel (%p950) target = $region80
      $region79: #{tpu_custom_call.1} parent=5 // pred_region
        %s953 = ssub.s32 %s22, 2
        // Predicated region
        $region81: #{tpu_custom_call.1} parent=79 // pred_check
          %p954 = pneg %p339
        $region82: #{tpu_custom_call.1} parent=79 // pred_check_branch
          %956 = sbr.rel (%p954) target = $region84
        $region83: #{tpu_custom_call.1} parent=79 // pred_region
          %s957 = sand.u32 %s324, 1
          %s958 = scalar_lea.sflag [#allocation3], %s957
          %s959 = sand.u32 %s324, 1
          %s960 = scalar_lea.vmem [#allocation2], %s959
          %962 = dma.done %s958, 16
        $region84: #{tpu_custom_call.1} parent=79 // pred_fallthru
          _
      $region80: #{tpu_custom_call.1} parent=5 // pred_fallthru
        _
    $region6: #{tpu_custom_call.1} parent=1 // loop_footer
      %s26 = sadd.s32 1, %s22
    $region7: #{tpu_custom_call.1} parent=1 // loop_footer_branch
      %21 = sbr.rel target = $region3
    $region8: #{tpu_custom_call.1} parent=1 // loop_exit
      _
    %963 = vsyncpa [#allocation3], 1
    %s964 = scalar_lea.sflag [#allocation3], 1
    %965 = vsyncpa %s964, 1

</llo_original>
